<compile_context>
chip_gen: v7x
topology: tpu7x:2x2x1
jax: 0.10.0
libtpu: 0.0.40
codegen_flags: <defaults>
</compile_context>

<pallas_src>
import functools

import jax
import jax.numpy as jnp
from jax.experimental import pallas as pl
from jax.experimental.pallas import tpu as pltpu

CURE_THRESHOLD = 0.8
_W2_PAD_ROWS = 8  # pad the tiny 2-row second layer to a full sublane for clean MXU tiling


def _round_up(x, m):
    return pl.cdiv(x, m) * m


def deepmcm_kernel(x_ref, w1_ref, b1_ref, w2_ref, b2_ref, out_ref):
    """Fused DeepMCM forward for one batch tile (batch on the lane axis).

    x_ref  : (D, T)        bf16  streamed batch tile
    w1_ref : (2H, D)       bf16  [W1_pi ; W1_surv]  (PyTorch (out, in) layout)
    b1_ref : (2H, 1)       f32
    w2_ref : (8, 2H)       f32   rows 0/1 = block-diag [W2_pi, 0] / [0, W2_surv], rows 2..7 zero
    b2_ref : (8, 1)        f32
    out_ref: (2, T)        f32   row 0 = pi, row 1 = h_pop
    """
    # ---- fused first layer of both networks on the MXU: bf16 operands, f32 accumulation
    hid = jnp.dot(w1_ref[...], x_ref[...], preferred_element_type=jnp.float32)
    hid = jnp.maximum(hid + b1_ref[...], 0.0)                      # (2H, T) f32

    # ---- fused block-diagonal second layer: (8, 2H) @ (2H, T)
    out2 = jnp.dot(w2_ref[...], hid, preferred_element_type=jnp.float32) + b2_ref[...]
    logits = out2[0:1, :]                                          # cure-rate head (no act after last linear)
    risk = jnp.maximum(out2[1:2, :], 0.0)                          # DeepSurv: ReLU after every linear

    # ---- mixture-cure epilogue (all f32; VPU + EUP)
    pi = jax.nn.sigmoid(-logits)                                   # (1, T)
    risk_u = jnp.where(pi < CURE_THRESHOLD, risk, 0.0)             # cured rows -> 0 (== index_select path)
    s_u = jnp.exp(-risk_u)
    one_m_pi = 1.0 - pi
    s_pop = pi + one_m_pi * s_u                                    # strictly > 0
    h_pop = one_m_pi * risk_u * s_u * pl.reciprocal(s_pop, approx=True)

    # single lane-dense store of the fused (2, T) output slab
    out_ref[...] = jnp.concatenate([pi, h_pop], axis=0)


@functools.partial(jax.jit, static_argnames=("tile_n",))
def deepmcm_forward(x, params, *, tile_n=2048):
    """x: (N, D) f32. params: PyTorch-layout weights:
         w1p (H, D), b1p (H,), w2p (1, H), b2p (1,), and likewise w1s/b1s/w2s/b2s.
       Returns (pi, h_pop), each (N, 1) f32."""
    n, d = x.shape
    h = params["w1p"].shape[0]

    # ---- fuse the two networks' parameters once in the wrapper (layout plumbing)
    w1 = jnp.concatenate([params["w1p"], params["w1s"]], axis=0)               # (2H, D)
    b1 = jnp.concatenate([params["b1p"], params["b1s"]], axis=0)[:, None]      # (2H, 1)
    zh = jnp.zeros((1, h), jnp.float32)
    w2_2 = jnp.concatenate(
        [jnp.concatenate([params["w2p"], zh], axis=1),
         jnp.concatenate([zh, params["w2s"]], axis=1)], axis=0)                # (2, 2H) block-diagonal
    b2_2 = jnp.concatenate([params["b2p"], params["b2s"]], axis=0)[:, None]    # (2, 1)
    w2 = jnp.zeros((_W2_PAD_ROWS, 2 * h), jnp.float32).at[:2].set(w2_2)        # (8, 2H)
    b2 = jnp.zeros((_W2_PAD_ROWS, 1), jnp.float32).at[:2].set(b2_2)            # (8, 1)

    # ---- lane-dense, padded, transposed batch layout
    tile = min(_round_up(tile_n, 128), _round_up(max(n, 1), 128))
    n_pad = _round_up(n, tile)
    x_p = jnp.pad(x, ((0, n_pad - n), (0, 0)))
    xt = x_p.T.astype(jnp.bfloat16)                                            # (D, n_pad) bf16
    w1_bf = w1.astype(jnp.bfloat16)

    grid = (n_pad // tile,)
    out = pl.pallas_call(
        deepmcm_kernel,
        out_shape=jax.ShapeDtypeStruct((2, n_pad), jnp.float32),
        grid=grid,
        in_specs=[
            pl.BlockSpec((d, tile), lambda i: (0, i)),          # streamed batch tile
            pl.BlockSpec((2 * h, d), lambda i: (0, 0)),         # resident fused first-layer weights
            pl.BlockSpec((2 * h, 1), lambda i: (0, 0)),
            pl.BlockSpec((_W2_PAD_ROWS, 2 * h), lambda i: (0, 0)),
            pl.BlockSpec((_W2_PAD_ROWS, 1), lambda i: (0, 0)),
        ],
        out_specs=pl.BlockSpec((2, tile), lambda i: (0, i)),
        compiler_params=pltpu.CompilerParams(
            dimension_semantics=("parallel",),                  # shard batch tiles across TCs (v7x megacore)
        ),
    )(xt, w1_bf, b1, w2, b2)

    pi = out[0, :n].reshape(n, 1)
    h_pop = out[1, :n].reshape(n, 1)
    return pi, h_pop


def _init_linear(key, fan_in, fan_out):
    """PyTorch nn.Linear init: W (out, in), b (out,), U(-1/sqrt(fan_in), 1/sqrt(fan_in))."""
    kw, kb = jax.random.split(key)
    bound = 1.0 / jnp.sqrt(jnp.float32(fan_in))
    w = jax.random.uniform(kw, (fan_out, fan_in), jnp.float32, -bound, bound)
    b = jax.random.uniform(kb, (fan_out,), jnp.float32, -bound, bound)
    return w, b


def _reference(x, p):
    """Pure-JAX reference mirroring the PyTorch forward. First-layer operands are
    bf16-quantized to match the kernel's MXU inputs; everything else in f32."""
    xq = x.astype(jnp.bfloat16).astype(jnp.float32)
    w1p = p["w1p"].astype(jnp.bfloat16).astype(jnp.float32)
    w1s = p["w1s"].astype(jnp.bfloat16).astype(jnp.float32)

    hp = jnp.maximum(xq @ w1p.T + p["b1p"], 0.0)
    logits = hp @ p["w2p"].T + p["b2p"]
    pi = jax.nn.sigmoid(-logits)

    hs = jnp.maximum(xq @ w1s.T + p["b1s"], 0.0)
    risk = jnp.maximum(hs @ p["w2s"].T + p["b2s"], 0.0)

    risk_u = jnp.where(pi < CURE_THRESHOLD, risk, 0.0)
    s_u = jnp.exp(-risk_u)
    s_pop = pi + (1.0 - pi) * s_u
    h_pop = (1.0 - pi) * risk_u * s_u / s_pop
    return pi, h_pop


if __name__ == "__main__":
    D, H = 16, 32  # input features, hidden width; both heads output dim 1

    key = jax.random.PRNGKey(0)
    kx, k1, k2, k3, k4, kx2 = jax.random.split(key, 6)

    w1p, b1p = _init_linear(k1, D, H)
    w2p, b2p = _init_linear(k2, H, 1)
    w1s, b1s = _init_linear(k3, D, H)
    w2s, b2s = _init_linear(k4, H, 1)
    params = dict(w1p=w1p, b1p=b1p, w2p=w2p, b2p=b2p,
                  w1s=w1s, b1s=b1s, w2s=w2s, b2s=b2s)

    # Small batch (single padded tile).
    n1 = 8
    x1 = jax.random.normal(kx, (n1, D), jnp.float32)
    pi1, hp1 = deepmcm_forward(x1, params, tile_n=128)
    jax.block_until_ready((pi1, hp1))
    pi1_ref, hp1_ref = _reference(x1, params)
    assert pi1.shape == (n1, 1) and hp1.shape == (n1, 1)
    assert jnp.allclose(pi1, pi1_ref, atol=5e-3, rtol=5e-3)
    assert jnp.allclose(hp1, hp1_ref, atol=1e-2, rtol=1e-2)

    # Larger ragged batch exercising the batch grid, pinned weights, and tail padding.
    n2 = 1000
    x2 = jax.random.normal(kx2, (n2, D), jnp.float32)
    pi2, hp2 = deepmcm_forward(x2, params, tile_n=256)
    jax.block_until_ready((pi2, hp2))
    pi2_ref, hp2_ref = _reference(x2, params)
    assert pi2.shape == (n2, 1) and hp2.shape == (n2, 1)
    assert jnp.allclose(pi2, pi2_ref, atol=5e-3, rtol=5e-3)
    assert jnp.allclose(hp2, hp2_ref, atol=1e-2, rtol=1e-2)

    print("KERNEL_OK")
</pallas_src>

<mosaic_0001>
module attributes {stable_mosaic.version = 11 : i64} {
  func.func @deepmcm_kernel(%arg0: i32, %arg1: memref<16x128xbf16, #tpu.memory_space<vmem>>, %arg2: memref<64x16xbf16, #tpu.memory_space<vmem>>, %arg3: memref<64x1xf32, #tpu.memory_space<vmem>>, %arg4: memref<8x64xf32, #tpu.memory_space<vmem>>, %arg5: memref<8x1xf32, #tpu.memory_space<vmem>>, %arg6: memref<2x128xf32, #tpu.memory_space<vmem>>) attributes {dimension_semantics = [#tpu.dimension_semantics<parallel>], iteration_bounds = array<i64: 1>, scalar_prefetch = 0 : i64, scratch_operands = 0 : i64, tpu.core_type = #tpu.core_type<tc>, window_params = [{transform_indices = @transform_0, window_bounds = array<i64: 16, 128>}, {pipeline_mode = #tpu.pipeline_mode<synchronous>, transform_indices = @transform_1, window_bounds = array<i64: 64, 16>}, {pipeline_mode = #tpu.pipeline_mode<synchronous>, transform_indices = @transform_2, window_bounds = array<i64: 64, 1>}, {pipeline_mode = #tpu.pipeline_mode<synchronous>, transform_indices = @transform_3, window_bounds = array<i64: 8, 64>}, {pipeline_mode = #tpu.pipeline_mode<synchronous>, transform_indices = @transform_4, window_bounds = array<i64: 8, 1>}, {transform_indices = @transform_5, window_bounds = array<i64: 2, 128>}]} {
    %c0 = arith.constant 0 : index
    %c0_0 = arith.constant 0 : index
    %0 = vector.load %arg2[%c0, %c0_0] : memref<64x16xbf16, #tpu.memory_space<vmem>>, vector<64x16xbf16>
    %c0_1 = arith.constant 0 : index
    %c0_2 = arith.constant 0 : index
    %1 = vector.load %arg1[%c0_1, %c0_2] : memref<16x128xbf16, #tpu.memory_space<vmem>>, vector<16x128xbf16>
    %cst = arith.constant dense<0.000000e+00> : vector<64x128xf32>
    %2 = tpu.matmul %0, %1, %cst {dimension_numbers = #tpu.dot_dimension_numbers<[1], [0], [0], [1], [0, 0, 1, 1], [], []>} : vector<64x16xbf16>, vector<16x128xbf16>, vector<64x128xf32> -> vector<64x128xf32>
    %c0_3 = arith.constant 0 : index
    %c0_4 = arith.constant 0 : index
    %3 = vector.load %arg3[%c0_3, %c0_4] : memref<64x1xf32, #tpu.memory_space<vmem>>, vector<64x1xf32>
    %4 = vector.broadcast %3 : vector<64x1xf32> to vector<64x128xf32>
    %5 = arith.addf %2, %4 : vector<64x128xf32>
    %cst_5 = arith.constant 0.000000e+00 : f32
    %6 = vector.broadcast %cst_5 : f32 to vector<64x128xf32>
    %7 = arith.maximumf %5, %6 : vector<64x128xf32>
    %c0_6 = arith.constant 0 : index
    %c0_7 = arith.constant 0 : index
    %8 = vector.load %arg4[%c0_6, %c0_7] : memref<8x64xf32, #tpu.memory_space<vmem>>, vector<8x64xf32>
    %cst_8 = arith.constant dense<0.000000e+00> : vector<8x128xf32>
    %9 = tpu.matmul %8, %7, %cst_8 {dimension_numbers = #tpu.dot_dimension_numbers<[1], [0], [0], [1], [0, 0, 1, 1], [], []>} : vector<8x64xf32>, vector<64x128xf32>, vector<8x128xf32> -> vector<8x128xf32>
    %c0_9 = arith.constant 0 : index
    %c0_10 = arith.constant 0 : index
    %10 = vector.load %arg5[%c0_9, %c0_10] : memref<8x1xf32, #tpu.memory_space<vmem>>, vector<8x1xf32>
    %11 = vector.broadcast %10 : vector<8x1xf32> to vector<8x128xf32>
    %12 = arith.addf %9, %11 : vector<8x128xf32>
    %13 = vector.extract_strided_slice %12 {offsets = [0, 0], sizes = [1, 128], strides = [1, 1]} : vector<8x128xf32> to vector<1x128xf32>
    %14 = vector.extract_strided_slice %12 {offsets = [1, 0], sizes = [1, 128], strides = [1, 1]} : vector<8x128xf32> to vector<1x128xf32>
    %cst_11 = arith.constant 0.000000e+00 : f32
    %15 = vector.broadcast %cst_11 : f32 to vector<1x128xf32>
    %16 = arith.maximumf %14, %15 : vector<1x128xf32>
    %cst_12 = arith.constant 0.000000e+00 : f32
    %17 = vector.broadcast %cst_12 : f32 to vector<1x128xf32>
    %18 = arith.subf %17, %13 : vector<1x128xf32>
    %19 = arith.negf %18 : vector<1x128xf32>
    %20 = math.exp %19 : vector<1x128xf32>
    %cst_13 = arith.constant 1.000000e+00 : f32
    %21 = vector.broadcast %cst_13 : f32 to vector<1x128xf32>
    %22 = arith.addf %21, %20 : vector<1x128xf32>
    %23 = arith.divf %21, %22 : vector<1x128xf32>
    %cst_14 = arith.constant 8.000000e-01 : f32
    %24 = vector.broadcast %cst_14 : f32 to vector<1x128xf32>
    %25 = arith.cmpf olt, %23, %24 : vector<1x128xf32>
    %cst_15 = arith.constant 0.000000e+00 : f32
    %26 = vector.broadcast %cst_15 : f32 to vector<1x128xf32>
    %27 = arith.select %25, %16, %26 : vector<1x128xi1>, vector<1x128xf32>
    %cst_16 = arith.constant 0.000000e+00 : f32
    %28 = vector.broadcast %cst_16 : f32 to vector<1x128xf32>
    %29 = arith.subf %28, %27 : vector<1x128xf32>
    %30 = math.exp %29 : vector<1x128xf32>
    %cst_17 = arith.constant 1.000000e+00 : f32
    %31 = vector.broadcast %cst_17 : f32 to vector<1x128xf32>
    %32 = arith.subf %31, %23 : vector<1x128xf32>
    %33 = arith.mulf %32, %30 : vector<1x128xf32>
    %34 = arith.addf %23, %33 : vector<1x128xf32>
    %35 = arith.mulf %32, %27 : vector<1x128xf32>
    %36 = arith.mulf %35, %30 : vector<1x128xf32>
    %37 = tpu.reciprocal %34 {approx = true} : vector<1x128xf32> -> vector<1x128xf32>
    %38 = arith.mulf %36, %37 : vector<1x128xf32>
    %39 = tpu.concatenate %23, %38 in 0 : vector<1x128xf32>, vector<1x128xf32> -> vector<2x128xf32>
    %c0_18 = arith.constant 0 : index
    %c0_19 = arith.constant 0 : index
    %40 = vector.load %arg6[%c0_18, %c0_19] : memref<2x128xf32, #tpu.memory_space<vmem>>, vector<2x128xf32>
    tpu.vector_store %arg6[%c0_18, %c0_19], %39 {strides = array<i32>} : memref<2x128xf32, #tpu.memory_space<vmem>>, vector<2x128xf32>,
    return
  }
  func.func @transform_0(%arg0: i32) -> (i32, i32) {
    %c0_i32 = arith.constant 0 : i32
    %c0_i32_0 = arith.constant 0 : i32
    return %c0_i32, %arg0 : i32, i32
  }
  func.func @transform_1(%arg0: i32) -> (i32, i32) {
    %c0_i32 = arith.constant 0 : i32
    %c0_i32_0 = arith.constant 0 : i32
    %c0_i32_1 = arith.constant 0 : i32
    return %c0_i32, %c0_i32_0 : i32, i32
  }
  func.func @transform_2(%arg0: i32) -> (i32, i32) {
    %c0_i32 = arith.constant 0 : i32
    %c0_i32_0 = arith.constant 0 : i32
    %c0_i32_1 = arith.constant 0 : i32
    return %c0_i32, %c0_i32_0 : i32, i32
  }
  func.func @transform_3(%arg0: i32) -> (i32, i32) {
    %c0_i32 = arith.constant 0 : i32
    %c0_i32_0 = arith.constant 0 : i32
    %c0_i32_1 = arith.constant 0 : i32
    return %c0_i32, %c0_i32_0 : i32, i32
  }
  func.func @transform_4(%arg0: i32) -> (i32, i32) {
    %c0_i32 = arith.constant 0 : i32
    %c0_i32_0 = arith.constant 0 : i32
    %c0_i32_1 = arith.constant 0 : i32
    return %c0_i32, %c0_i32_0 : i32, i32
  }
  func.func @transform_5(%arg0: i32) -> (i32, i32) {
    %c0_i32 = arith.constant 0 : i32
    %c0_i32_0 = arith.constant 0 : i32
    return %c0_i32, %arg0 : i32, i32
  }
}

</mosaic_0001>

<llo_original>
// kernel: deepmcm_forward.1
$region0: #{deepmcm_forward.1}
  #allocation0 [shape = 'u32[]', space=smem, size = 0x4, offset = 0x4, fixed_abs, tag = 'smem constant byte address 0x4 - core index']
  #allocation1 [shape = 'u32[144,128]{1,0:T(1,128)}', space=vmem, size = 0x12000, scoped, tag = 'internal scratch']
  %s0 = inlined_call_operand.vmem [shape: bf16[16,128], index: 0, kind: input, shape index: {}]
  %s1 = inlined_call_operand.vmem [shape: bf16[64,16], index: 1, kind: input, shape index: {}]
  %s2 = inlined_call_operand.vmem [shape: f32[64,1], index: 2, kind: input, shape index: {}]
  %s3 = inlined_call_operand.vmem [shape: f32[8,64], index: 3, kind: input, shape index: {}]
  %s4 = inlined_call_operand.vmem [shape: f32[8,1], index: 4, kind: input, shape index: {}]
  %s5 = inlined_call_operand.vmem [shape: f32[2,128], index: 5, kind: output, shape index: {}]
  %s6 = sld [smem:[#allocation0]]
  $region30: #{deepmcm_forward.1} parent=0
    _
  %s8 = ssub.s32 1, %s6
  %s9 = scalar_select 0, %s8, %s6
  // Predicated region
  $region2: #{deepmcm_forward.1} parent=0 // pred_check
    _
  $region3: #{deepmcm_forward.1} parent=0 // pred_check_branch
    %11 = sbr.rel (0) target = $region5
  $region4: #{deepmcm_forward.1} parent=0 // pred_region
    _
  $region5: #{deepmcm_forward.1} parent=0 // pred_fallthru
    _
  // Predicated region
  $region6: #{deepmcm_forward.1} parent=0 // pred_check
    _
  $region7: #{deepmcm_forward.1} parent=0 // pred_check_branch
    %13 = sbr.rel (0) target = $region9
  $region8: #{deepmcm_forward.1} parent=0 // pred_region
    _
  $region9: #{deepmcm_forward.1} parent=0 // pred_fallthru
    _
  // Predicated region
  $region10: #{deepmcm_forward.1} parent=0 // pred_check
    _
  $region11: #{deepmcm_forward.1} parent=0 // pred_check_branch
    %15 = sbr.rel (0) target = $region13
  $region12: #{deepmcm_forward.1} parent=0 // pred_region
    _
  $region13: #{deepmcm_forward.1} parent=0 // pred_fallthru
    _
  // Predicated region
  $region14: #{deepmcm_forward.1} parent=0 // pred_check
    _
  $region15: #{deepmcm_forward.1} parent=0 // pred_check_branch
    %17 = sbr.rel (0) target = $region17
  $region16: #{deepmcm_forward.1} parent=0 // pred_region
    _
  $region17: #{deepmcm_forward.1} parent=0 // pred_fallthru
    _
  // Predicated region
  $region18: #{deepmcm_forward.1} parent=0 // pred_check
    _
  $region19: #{deepmcm_forward.1} parent=0 // pred_check_branch
    %19 = sbr.rel (0) target = $region21
  $region20: #{deepmcm_forward.1} parent=0 // pred_region
    _
  $region21: #{deepmcm_forward.1} parent=0 // pred_fallthru
    _
  %v21 = vld [vmem:[%s1] sm:$0xf]
  %v22 = vld [vmem:[%s1 + $0x4] sm:$0xf]
  %v23 = vld [vmem:[%s1 + $0x8] sm:$0xf]
  %v24 = vld [vmem:[%s1 + $0xc] sm:$0xf]
  %v25 = vld [vmem:[%s1 + $0x10] sm:$0xf]
  %v26 = vld [vmem:[%s1 + $0x14] sm:$0xf]
  %v27 = vld [vmem:[%s1 + $0x18] sm:$0xf]
  %v28 = vld [vmem:[%s1 + $0x1c] sm:$0xf]
  %v29 = vld [vmem:[%s0] sm:$0xf]
  %v30 = vld [vmem:[%s0 + $0x4] sm:$0xf]
  %v31 = vld [vmem:[%s2] sm:$0xff]
  %v32 = vld [vmem:[%s2 + $0x8] sm:$0xff]
  %v33 = vld [vmem:[%s2 + $0x10] sm:$0xff]
  %v34 = vld [vmem:[%s2 + $0x18] sm:$0xff]
  %v35 = vld [vmem:[%s2 + $0x20] sm:$0xff]
  %v36 = vld [vmem:[%s2 + $0x28] sm:$0xff]
  %v37 = vld [vmem:[%s2 + $0x30] sm:$0xff]
  %v38 = vld [vmem:[%s2 + $0x38] sm:$0xff]
  %40 = vset.pattern.permute.xlu0 0
  %41 = vperm.xlu0 %40, %v31
  %v42 = vpop.permute.xlu0 %41
  %45 = vset.pattern.permute.xlu0 0
  %46 = vperm.xlu0 %45, %v32
  %v47 = vpop.permute.xlu0 %46
  %50 = vset.pattern.permute.xlu0 0
  %51 = vperm.xlu0 %50, %v33
  %v52 = vpop.permute.xlu0 %51
  %55 = vset.pattern.permute.xlu0 0
  %56 = vperm.xlu0 %55, %v34
  %v57 = vpop.permute.xlu0 %56
  %60 = vset.pattern.permute.xlu0 0
  %61 = vperm.xlu0 %60, %v35
  %v62 = vpop.permute.xlu0 %61
  %65 = vset.pattern.permute.xlu0 0
  %66 = vperm.xlu0 %65, %v36
  %v67 = vpop.permute.xlu0 %66
  %70 = vset.pattern.permute.xlu0 0
  %71 = vperm.xlu0 %70, %v37
  %v72 = vpop.permute.xlu0 %71
  %75 = vset.pattern.permute.xlu0 0
  %76 = vperm.xlu0 %75, %v38
  %v77 = vpop.permute.xlu0 %76
  %v87 = vunpack.c.l.b16 %v21
  %v88 = vunpack.c.l.b16 %v22
  %v89 = vunpack.c.l.b16 %v23
  %v90 = vunpack.c.l.b16 %v24
  %v91 = vunpack.c.l.b16 %v25
  %v92 = vunpack.c.l.b16 %v26
  %v93 = vunpack.c.l.b16 %v27
  %v94 = vunpack.c.l.b16 %v28
  %v95 = vpack.c.b16 %v88, %v87
  %v96 = vpack.c.b16 %v90, %v89
  %v97 = vpack.c.b16 %v92, %v91
  %v98 = vpack.c.b16 %v94, %v93
  %v101 = vunpack.c.l.b16 %v29
  %v102 = vunpack.c.l.b16 %v30
  %v103 = vpack.c.b16 %v102, %v101
  %vm105 = vcmask 130048
  %v107 = vsel %vm105, %v95, 0
  %v110 = vsel %vm105, %v96, 0
  %v113 = vsel %vm105, %v97, 0
  %v116 = vsel %vm105, %v98, 0
  %118 = vmatprep.subr.bf16.mxu0 0
  %119 = vmatpush1.bf16.msra.mxu0 %v103
  %120 = vmatprep.subr.bf16.mxu0 0
  %121 = vmatpush1.bf16.msra.mxu0 0
  %122 = vmatprep.subr.bf16.mxu0 0
  %123 = vmatpush1.bf16.msra.mxu0 0
  %124 = vmatprep.subr.bf16.mxu0 0
  %125 = vmatpush1.bf16.msra.mxu0 0
  %126 = vmatprep.subr.bf16.mxu0 0
  %127 = vmatpush1.bf16.msra.mxu0 0
  %128 = vmatprep.subr.bf16.mxu0 0
  %129 = vmatpush1.bf16.msra.mxu0 0
  %130 = vmatprep.subr.bf16.mxu0 0
  %131 = vmatpush1.bf16.msra.mxu0 0
  %132 = vmatprep.subr.bf16.mxu0 0
  %133 = vmatpush1.bf16.msra.mxu0 0
  %134 = vmatprep.subr.bf16.mxu0 0
  %135 = vmatpush1.bf16.msra.mxu0 0
  %136 = vmatprep.subr.bf16.mxu0 0
  %137 = vmatpush1.bf16.msra.mxu0 0
  %138 = vmatprep.subr.bf16.mxu0 0
  %139 = vmatpush1.bf16.msra.mxu0 0
  %140 = vmatprep.subr.bf16.mxu0 0
  %141 = vmatpush1.bf16.msra.mxu0 0
  %142 = vmatprep.subr.bf16.mxu0 0
  %143 = vmatpush1.bf16.msra.mxu0 0
  %144 = vmatprep.subr.bf16.mxu0 0
  %145 = vmatpush1.bf16.msra.mxu0 0
  %146 = vmatprep.subr.bf16.mxu0 0
  %147 = vmatpush1.bf16.msra.mxu0 0
  %148 = vmatprep.subr.bf16.mxu0 0
  %149 = vmatpush1.bf16.msra.mxu0 0
  %150 = vmatprep.mubr.bf16.mxu0 0
  %151 = vmatmul.mubr.bf16.gmra.mrb[0].mxu0 %v107
  %v152 = vpop.f32.mrb[0].mxu0
  %v153 = vadd.f32 %v42, %v152
  %v154 = vpop.f32.mrb[0].mxu0
  %v155 = vpop.f32.mrb[0].mxu0
  %v156 = vadd.f32 %v47, %v155
  %v157 = vpop.f32.mrb[0].mxu0
  %158 = vmatprep.mubr.bf16.mxu0 0
  %159 = vmatmul.mubr.bf16.gmra.mrb[0].mxu0 %v110
  %v160 = vpop.f32.mrb[0].mxu0
  %v161 = vadd.f32 %v52, %v160
  %v162 = vpop.f32.mrb[0].mxu0
  %v163 = vpop.f32.mrb[0].mxu0
  %v164 = vadd.f32 %v57, %v163
  %v165 = vpop.f32.mrb[0].mxu0
  %166 = vmatprep.mubr.bf16.mxu0 0
  %167 = vmatmul.mubr.bf16.gmra.mrb[0].mxu0 %v113
  %v168 = vpop.f32.mrb[0].mxu0
  %v169 = vadd.f32 %v62, %v168
  %v170 = vpop.f32.mrb[0].mxu0
  %v171 = vpop.f32.mrb[0].mxu0
  %v172 = vadd.f32 %v67, %v171
  %v173 = vpop.f32.mrb[0].mxu0
  %174 = vmatprep.mubr.bf16.mxu0 0
  %175 = vmatmul.mubr.bf16.gmra.mrb[0].mxu0 %v116
  %v176 = vpop.f32.mrb[0].mxu0
  %v177 = vadd.f32 %v72, %v176
  %v178 = vpop.f32.mrb[0].mxu0
  %v179 = vpop.f32.mrb[0].mxu0
  %v180 = vadd.f32 %v77, %v179
  %v181 = vpop.f32.mrb[0].mxu0
  %182 = vdwg.mxu0
  %v183 = vmax.f32 %v153, 0.0
  %v184 = vmax.f32 %v156, 0.0
  %v185 = vmax.f32 %v161, 0.0
  %v186 = vmax.f32 %v164, 0.0
  %v187 = vmax.f32 %v169, 0.0
  %v188 = vmax.f32 %v172, 0.0
  %v189 = vmax.f32 %v177, 0.0
  %v190 = vmax.f32 %v180, 0.0
  %v191 = vld [vmem:[%s3] sm:$0xff]
  %v192 = vld [vmem:[%s4] sm:$0xff]
  %194 = vset.pattern.permute.xlu0 0
  %195 = vperm.xlu0 %194, %v192
  %v196 = vpop.permute.xlu0 %195
  %vm198 = vcmask 523264
  %v200 = vsel %vm198, %v191, 0
  %202 = vmatprep.subr.mxu0 0.0
  %203 = vmatpush1.msra.mxu0 %v183
  %204 = vmatprep.subr.mxu0 0.0
  %205 = vmatpush1.msra.mxu0 %v184
  %206 = vmatprep.subr.mxu0 0.0
  %207 = vmatpush1.msra.mxu0 %v185
  %208 = vmatprep.subr.mxu0 0.0
  %209 = vmatpush1.msra.mxu0 %v186
  %210 = vmatprep.subr.mxu0 0.0
  %211 = vmatpush1.msra.mxu0 %v187
  %212 = vmatprep.subr.mxu0 0.0
  %213 = vmatpush1.msra.mxu0 %v188
  %214 = vmatprep.subr.mxu0 0.0
  %215 = vmatpush1.msra.mxu0 %v189
  %216 = vmatprep.subr.mxu0 0.0
  %217 = vmatpush1.msra.mxu0 %v190
  %218 = vmatprep.subr.mxu0 0.0
  %219 = vmatpush1.msra.mxu0 0.0
  %220 = vmatprep.subr.mxu0 0.0
  %221 = vmatpush1.msra.mxu0 0.0
  %222 = vmatprep.subr.mxu0 0.0
  %223 = vmatpush1.msra.mxu0 0.0
  %224 = vmatprep.subr.mxu0 0.0
  %225 = vmatpush1.msra.mxu0 0.0
  %226 = vmatprep.subr.mxu0 0.0
  %227 = vmatpush1.msra.mxu0 0.0
  %228 = vmatprep.subr.mxu0 0.0
  %229 = vmatpush1.msra.mxu0 0.0
  %230 = vmatprep.subr.mxu0 0.0
  %231 = vmatpush1.msra.mxu0 0.0
  %232 = vmatprep.subr.mxu0 0.0
  %233 = vmatpush1.msra.mxu0 0.0
  %234 = vmatprep.subr.mxu0 0.0
  %235 = vmatpush1.msra.mxu0 0.0
  %236 = vmatprep.subr.mxu0 0.0
  %237 = vmatpush1.msra.mxu0 0.0
  %238 = vmatprep.subr.mxu0 0.0
  %239 = vmatpush1.msra.mxu0 0.0
  %240 = vmatprep.subr.mxu0 0.0
  %241 = vmatpush1.msra.mxu0 0.0
  %242 = vmatprep.subr.mxu0 0.0
  %243 = vmatpush1.msra.mxu0 0.0
  %244 = vmatprep.subr.mxu0 0.0
  %245 = vmatpush1.msra.mxu0 0.0
  %246 = vmatprep.subr.mxu0 0.0
  %247 = vmatpush1.msra.mxu0 0.0
  %248 = vmatprep.subr.mxu0 0.0
  %249 = vmatpush1.msra.mxu0 0.0
  %250 = vmatprep.subr.mxu0 0.0
  %251 = vmatpush1.msra.mxu0 0.0
  %252 = vmatprep.subr.mxu0 0.0
  %253 = vmatpush1.msra.mxu0 0.0
  %254 = vmatprep.subr.mxu0 0.0
  %255 = vmatpush1.msra.mxu0 0.0
  %256 = vmatprep.subr.mxu0 0.0
  %257 = vmatpush1.msra.mxu0 0.0
  %258 = vmatprep.subr.mxu0 0.0
  %259 = vmatpush1.msra.mxu0 0.0
  %260 = vmatprep.subr.mxu0 0.0
  %261 = vmatpush1.msra.mxu0 0.0
  %262 = vmatprep.subr.mxu0 0.0
  %263 = vmatpush1.msra.mxu0 0.0
  %264 = vmatprep.subr.mxu0 0.0
  %265 = vmatpush1.msra.mxu0 0.0
  %266 = vmatprep.mubr.f32.mxu0 0.0
  %267 = vmatmul.mubr.f32.gmra.mrb[0].mxu0 %v200
  %v268 = vpop.f32.mrb[0].mxu0
  %v269 = vadd.f32 %v196, %v268
  %v270 = vpop.f32.mrb[0].mxu0
  %271 = vdwg.mxu0
  %v272 = vmax.f32 %v269, 0.0
  %v273 = vsub.f32 0.0, %v269
  %v274 = vxor.u32 %v273, 2147483648
  %v275 = vmul.f32 %v274, 1.442695
  %v276 = vpow.pop %v275
  %v277 = vadd.f32 %v276, 1.0
  %v278 = vrcp.pop %v277
  %v279 = vmul.f32 1.0, %v278
  %vm280 = vcmp.lt.f32.partialorder %v279, 0.8
  %v282 = vrot.slane %v272, 1
  %v284 = vsel %vm280, %v282, 0.0
  %v285 = vsub.f32 0.0, %v284
  %v286 = vmul.f32 %v285, 1.442695
  %v287 = vpow.pop %v286
  %v288 = vsub.f32 1.0, %v279
  %v289 = vmul.f32 %v288, %v287
  %v290 = vadd.f32 %v279, %v289
  %v291 = vmul.f32 %v288, %v284
  %v292 = vmul.f32 %v291, %v287
  %v293 = vrcp.pop %v290
  %v294 = vmul.f32 %v292, %v293
  %v296 = vrot.slane %v294, 7
  %vm298 = vcmask 1040384
  %v299 = vsel %vm298, %v279, %v296
  %300 = vst [vmem:[%s5] sm:$0x3] %v299
  // Predicated region
  $region22: #{deepmcm_forward.1} parent=0 // pred_check
    _
  $region23: #{deepmcm_forward.1} parent=0 // pred_check_branch
    %302 = sbr.rel (0) target = $region25
  $region24: #{deepmcm_forward.1} parent=0 // pred_region
    _
  $region25: #{deepmcm_forward.1} parent=0 // pred_fallthru
    _
  // Predicated region
  $region26: #{deepmcm_forward.1} parent=0 // pred_check
    _
  $region27: #{deepmcm_forward.1} parent=0 // pred_check_branch
    %304 = sbr.rel (0) target = $region29
  $region28: #{deepmcm_forward.1} parent=0 // pred_region
    _
  $region29: #{deepmcm_forward.1} parent=0 // pred_fallthru
    _

</llo_original>
